<compile_context>
chip_gen: v7x
topology: tpu7x:2x2x1
jax: 0.10.0
libtpu: 0.0.40
codegen_flags: <defaults>
</compile_context>

<pallas_src>
import functools

import jax
import jax.numpy as jnp
from jax.experimental import pallas as pl
from jax.experimental.pallas import tpu as pltpu


# ----------------------------------------------------------------------------
# Kernel
# ----------------------------------------------------------------------------
def attention_kernel(x_ref, w_ref, o_ref, scores_ref, acc_ref, *,
                     s_chunk, use_mxu, unroll):
    # x_ref:      (Bt, S, H)            input slab (native dtype, VMEM)
    # w_ref:      (1, H)                projection weights (f32, VMEM)
    # o_ref:      (Bt, H)               output block
    # scores_ref: (n_chunks, Bt, s_chunk) f32 scratch (scores, then probs)
    # acc_ref:    (Bt, H)               f32 accumulator scratch
    bt, seq, hidden = x_ref.shape
    n_chunks = seq // s_chunk

    w = w_ref[...].astype(jnp.float32)                      # (1, H)
    w_col = jnp.reshape(w, (hidden, 1)) if use_mxu else None  # hoisted reshape

    # ---- Pass 1: score projection, chunked over S (bounds f32 temporaries) --
    def score_chunk(i, carry):
        off = pl.multiple_of(i * s_chunk, s_chunk)
        xc = x_ref[:, pl.ds(off, s_chunk), :].astype(jnp.float32)  # (Bt,sc,H)
        if use_mxu:
            # v7x: offload the H-contraction to the (otherwise idle) MXU.
            s = jnp.dot(xc.reshape(bt * s_chunk, hidden), w_col,
                        preferred_element_type=jnp.float32,
                        precision=jax.lax.Precision.HIGHEST)
            s = s.reshape(bt, s_chunk)
        else:
            # v5e/v6e: VPU broadcast-multiply + lane reduce (HBM-bound anyway).
            s = jnp.sum(xc * w[:, None, :], axis=-1)               # (Bt, sc)
        scores_ref[i] = s
        return carry

    jax.lax.fori_loop(0, n_chunks, score_chunk, 0, unroll=unroll)

    # ---- Softmax over the seq axis (== dim=1 of the (B, S, 1) tensor) -------
    # (bias omitted: softmax over seq is shift-invariant)
    scores = scores_ref[...]                                        # (nc,Bt,sc)
    m = jnp.max(jnp.max(scores, axis=-1, keepdims=True),
                axis=0, keepdims=True)                              # (1,Bt,1)
    e = jnp.exp(scores - m)
    denom = jnp.sum(jnp.sum(e, axis=-1, keepdims=True),
                    axis=0, keepdims=True)                          # (1,Bt,1)
    scores_ref[...] = e * pl.reciprocal(denom, approx=False)        # probs

    # ---- Pass 2: weighted sum over seq, chunked, accumulate in f32 ----------
    acc_ref[...] = jnp.zeros_like(acc_ref)

    def wsum_chunk(i, carry):
        off = pl.multiple_of(i * s_chunk, s_chunk)
        xc = x_ref[:, pl.ds(off, s_chunk), :].astype(jnp.float32)   # (Bt,sc,H)
        pc = scores_ref[i]                                          # (Bt, sc)
        acc_ref[...] += jnp.sum(xc * pc[:, :, None], axis=1)        # (Bt, H)
        return carry

    jax.lax.fori_loop(0, n_chunks, wsum_chunk, 0, unroll=unroll)

    o_ref[...] = acc_ref[...].astype(o_ref.dtype)


# ----------------------------------------------------------------------------
# Hardware-aware tiling helpers
# ----------------------------------------------------------------------------
def _tpu_generation():
    try:
        kind = jax.devices()[0].device_kind.lower()
    except Exception:
        return "unknown"
    for g in ("v7", "v6", "v5"):
        if g in kind:
            return g
    return "unknown"


def _hw_config():
    gen = _tpu_generation()
    if gen == "v7":
        # 64 MiB VMEM / TC, 2 TCs, ~3.2 TB/s: smaller blocks, >=2 steps per
        # core (>=4 total), MXU offload for the H-contraction.
        return dict(budget_bytes=5 << 20, vmem_limit=48 << 20,
                    min_steps=4, use_mxu=True)
    if gen == "v6":
        return dict(budget_bytes=14 << 20, vmem_limit=96 << 20,
                    min_steps=2, use_mxu=False)
    if gen == "v5":
        return dict(budget_bytes=12 << 20, vmem_limit=96 << 20,
                    min_steps=2, use_mxu=False)
    # Unknown chip: conservative (fits any generation's VMEM).
    return dict(budget_bytes=6 << 20, vmem_limit=48 << 20,
                min_steps=2, use_mxu=False)


def _choose_block_b(B, S, H, itemsize, *, budget_bytes, min_steps):
    """Batch tile: VMEM-budgeted against the *native-dtype* block (the kernel
    only materializes one f32 S-chunk at a time), kept as either a multiple of
    8 or exactly B so the (Bt, H) output block is sublane-dense, and clamped so
    there are at least `min_steps` grid steps (pipelining / megacore)."""
    if B <= 8:
        return int(B)                       # full batch; block dims == array dims
    row_bytes = S * H * int(itemsize)
    bt = max(1, budget_bytes // row_bytes)
    bt = min(bt, B)
    if min_steps > 1:
        bt = min(bt, pl.cdiv(B, min_steps))
    bt = max(8, (int(bt) // 8) * 8)         # multiple of 8 (dense sublane tile)
    return int(min(bt, B))


def _choose_s_chunk(S, block_b, H, chunk_budget=2 << 20):
    """Largest divisor of S whose (block_b, s_chunk, H) f32 chunk fits the
    chunk budget, preferring multiples of 8 for aligned sublane slices."""
    target = max(1, chunk_budget // (block_b * H * 4))
    if target >= S:
        return S
    divs = [d for d in range(1, S + 1) if S % d == 0 and d <= target]
    mult8 = [d for d in divs if d % 8 == 0]
    return max(mult8) if mult8 else max(divs)


# ----------------------------------------------------------------------------
# Wrapper
# ----------------------------------------------------------------------------
def attention_forward(outputs, w, b=None, *, block_b=None):
    """outputs: (B, S, H); w: (H, 1) / (1, H) / (H,); b: ignored (exact no-op
    under the softmax over the seq axis).  Returns (B, H) in outputs.dtype."""
    B, S, H = outputs.shape
    del b  # softmax shift-invariance makes the scalar bias a mathematical no-op

    cfg = _hw_config()
    w_row = jnp.reshape(w, (1, H)).astype(jnp.float32)      # lane-dense weights

    itemsize = jnp.dtype(outputs.dtype).itemsize
    if block_b is None:
        block_b = _choose_block_b(B, S, H, itemsize,
                                  budget_bytes=cfg["budget_bytes"],
                                  min_steps=cfg["min_steps"])
    s_chunk = _choose_s_chunk(S, block_b, H)
    n_chunks = S // s_chunk
    unroll = n_chunks <= 8                  # short fixed trip count -> unroll

    grid = (pl.cdiv(B, block_b),)
    kernel = functools.partial(attention_kernel, s_chunk=s_chunk,
                               use_mxu=cfg["use_mxu"], unroll=unroll)

    return pl.pallas_call(
        kernel,
        out_shape=jax.ShapeDtypeStruct((B, H), outputs.dtype),
        grid=grid,
        in_specs=[
            pl.BlockSpec((block_b, S, H), lambda i: (i, 0, 0)),
            pl.BlockSpec((1, H), lambda i: (0, 0)),
        ],
        out_specs=pl.BlockSpec((block_b, H), lambda i: (i, 0)),
        scratch_shapes=[
            pltpu.VMEM((n_chunks, block_b, s_chunk), jnp.float32),  # scores/probs
            pltpu.VMEM((block_b, H), jnp.float32),                  # accumulator
        ],
        compiler_params=pltpu.CompilerParams(
            dimension_semantics=("parallel",),
            vmem_limit_bytes=cfg["vmem_limit"],
        ),
    )(outputs, w_row)


def attention_ref(outputs, w, b):
    # Pure-JAX reference mirroring the PyTorch forward exactly.
    scores = jnp.sum(outputs * jnp.reshape(w, (1, 1, -1)),
                     axis=-1, keepdims=True) + b[0, 0]       # (B, S, 1)
    attn = jax.nn.softmax(scores, axis=1)                    # (B, S, 1)
    return jnp.sum(outputs * attn, axis=1)                   # (B, H)


# ----------------------------------------------------------------------------
if __name__ == "__main__":
    key = jax.random.PRNGKey(0)
    k_x, k_w, k_b = jax.random.split(key, 3)

    # MXU (v7x) path uses HIGHEST-precision bf16 passes for f32 operands;
    # loosen the tolerance slightly on that path only.
    tol = 1e-4 if _hw_config()["use_mxu"] else 1e-5

    # Small smoke-test shape implied by the module (batch=2, seq=8, hidden=32).
    B, S, H = 2, 8, 32
    outputs = jax.random.normal(k_x, (B, S, H), dtype=jnp.float32)
    # nn.Linear(hidden, 1): PyTorch weight is (1, H); we store its transpose.
    w = jax.random.normal(k_w, (H, 1), dtype=jnp.float32) * 0.1
    b = jax.random.normal(k_b, (1, 1), dtype=jnp.float32) * 0.1

    out = jax.block_until_ready(attention_forward(outputs, w, b))
    ref = attention_ref(outputs, w, b)
    assert out.shape == (B, H)
    assert jnp.allclose(out, ref, atol=tol, rtol=tol), "mismatch vs reference"

    # Second check: B=12 exercises the previously-flagged small-batch case
    # (block_b=8, partial last block) with a lane-dense H=128.
    B2, S2, H2 = 12, 64, 128
    k_x2, k_w2 = jax.random.split(k_b, 2)
    outputs2 = jax.random.normal(k_x2, (B2, S2, H2), dtype=jnp.float32)
    w2 = jax.random.normal(k_w2, (H2, 1), dtype=jnp.float32) * 0.1
    b2 = jnp.zeros((1, 1), dtype=jnp.float32)

    out2 = jax.block_until_ready(attention_forward(outputs2, w2, b2))
    ref2 = attention_ref(outputs2, w2, b2)
    assert out2.shape == (B2, H2)
    assert jnp.allclose(out2, ref2, atol=tol, rtol=tol), \
        "mismatch vs reference (large)"

    print("KERNEL_OK")
</pallas_src>

<mosaic_0001>
module attributes {stable_mosaic.version = 11 : i64} {
  func.func @attention_kernel(%arg0: i32, %arg1: memref<2x8x32xf32, #tpu.memory_space<vmem>>, %arg2: memref<1x32xf32, #tpu.memory_space<vmem>>, %arg3: memref<2x32xf32, #tpu.memory_space<vmem>>, %arg4: memref<1x2x8xf32, #tpu.memory_space<vmem>>, %arg5: memref<2x32xf32, #tpu.memory_space<vmem>>) attributes {dimension_semantics = [#tpu.dimension_semantics<parallel>], iteration_bounds = array<i64: 1>, scalar_prefetch = 0 : i64, scratch_operands = 2 : i64, tpu.core_type = #tpu.core_type<tc>, window_params = [{transform_indices = @transform_0, window_bounds = array<i64: 2, 8, 32>}, {pipeline_mode = #tpu.pipeline_mode<synchronous>, transform_indices = @transform_1, window_bounds = array<i64: 1, 32>}, {transform_indices = @transform_2, window_bounds = array<i64: 2, 32>}]} {
    %c0 = arith.constant 0 : index
    %c0_0 = arith.constant 0 : index
    %0 = vector.load %arg2[%c0, %c0_0] : memref<1x32xf32, #tpu.memory_space<vmem>>, vector<1x32xf32>
    %c0_i32 = arith.constant 0 : i32
    %c8_i32 = arith.constant 8 : i32
    %1 = arith.muli %c0_i32, %c8_i32 : i32
    %2 = tpu.assume_multiple %1, 8 : i32
    %c0_1 = arith.constant 0 : index
    %3 = arith.index_cast %2 : i32 to index
    %c0_2 = arith.constant 0 : index
    %4 = vector.load %arg1[%c0_1, %3, %c0_2] : memref<2x8x32xf32, #tpu.memory_space<vmem>>, vector<2x8x32xf32>
    %5 = vector.shape_cast %0 : vector<1x32xf32> to vector<1x1x32xf32>
    %6 = vector.broadcast %5 : vector<1x1x32xf32> to vector<2x8x32xf32>
    %7 = arith.mulf %4, %6 : vector<2x8x32xf32>
    %cst = arith.constant dense<0.000000e+00> : vector<2x8xf32>
    %8 = vector.multi_reduction <add>, %7, %cst [2] : vector<2x8x32xf32> to vector<2x8xf32>
    %9 = arith.index_cast %c0_i32 : i32 to index
    %c0_3 = arith.constant 0 : index
    %c0_4 = arith.constant 0 : index
    %10 = vector.load %arg4[%9, %c0_3, %c0_4] : memref<1x2x8xf32, #tpu.memory_space<vmem>>, vector<1x2x8xf32>
    %11 = vector.shape_cast %10 : vector<1x2x8xf32> to vector<2x8xf32>
    %12 = vector.shape_cast %8 : vector<2x8xf32> to vector<1x2x8xf32>
    tpu.vector_store %arg4[%9, %c0_3, %c0_4], %12 {strides = array<i32>} : memref<1x2x8xf32, #tpu.memory_space<vmem>>, vector<1x2x8xf32>,
    %c1_i32 = arith.constant 1 : i32
    %c0_5 = arith.constant 0 : index
    %c0_6 = arith.constant 0 : index
    %c0_7 = arith.constant 0 : index
    %13 = vector.load %arg4[%c0_5, %c0_6, %c0_7] : memref<1x2x8xf32, #tpu.memory_space<vmem>>, vector<1x2x8xf32>
    %cst_8 = arith.constant dense<0xFF800000> : vector<1x2xf32>
    %14 = vector.multi_reduction <maximumf>, %13, %cst_8 [2] : vector<1x2x8xf32> to vector<1x2xf32>
    %15 = vector.shape_cast %14 : vector<1x2xf32> to vector<1x2x1xf32>
    %cst_9 = arith.constant dense<0xFF800000> : vector<2x1xf32>
    %16 = vector.multi_reduction <maximumf>, %15, %cst_9 [0] : vector<1x2x1xf32> to vector<2x1xf32>
    %17 = vector.shape_cast %16 : vector<2x1xf32> to vector<1x2x1xf32>
    %18 = vector.broadcast %17 : vector<1x2x1xf32> to vector<1x2x8xf32>
    %19 = arith.subf %13, %18 : vector<1x2x8xf32>
    %20 = math.exp %19 : vector<1x2x8xf32>
    %cst_10 = arith.constant dense<0.000000e+00> : vector<1x2xf32>
    %21 = vector.multi_reduction <add>, %20, %cst_10 [2] : vector<1x2x8xf32> to vector<1x2xf32>
    %22 = vector.shape_cast %21 : vector<1x2xf32> to vector<1x2x1xf32>
    %cst_11 = arith.constant dense<0.000000e+00> : vector<2x1xf32>
    %23 = vector.multi_reduction <add>, %22, %cst_11 [0] : vector<1x2x1xf32> to vector<2x1xf32>
    %24 = vector.shape_cast %23 : vector<2x1xf32> to vector<1x2x1xf32>
    %25 = tpu.reciprocal %24 : vector<1x2x1xf32> -> vector<1x2x1xf32>
    %26 = vector.broadcast %25 : vector<1x2x1xf32> to vector<1x2x8xf32>
    %27 = arith.mulf %20, %26 : vector<1x2x8xf32>
    %c0_12 = arith.constant 0 : index
    %c0_13 = arith.constant 0 : index
    %c0_14 = arith.constant 0 : index
    %28 = vector.load %arg4[%c0_12, %c0_13, %c0_14] : memref<1x2x8xf32, #tpu.memory_space<vmem>>, vector<1x2x8xf32>
    tpu.vector_store %arg4[%c0_12, %c0_13, %c0_14], %27 {strides = array<i32>} : memref<1x2x8xf32, #tpu.memory_space<vmem>>, vector<1x2x8xf32>,
    %cst_15 = arith.constant 0.000000e+00 : f32
    %29 = vector.broadcast %cst_15 : f32 to vector<2x32xf32>
    %c0_16 = arith.constant 0 : index
    %c0_17 = arith.constant 0 : index
    %30 = vector.load %arg5[%c0_16, %c0_17] : memref<2x32xf32, #tpu.memory_space<vmem>>, vector<2x32xf32>
    tpu.vector_store %arg5[%c0_16, %c0_17], %29 {strides = array<i32>} : memref<2x32xf32, #tpu.memory_space<vmem>>, vector<2x32xf32>,
    %c0_i32_18 = arith.constant 0 : i32
    %c8_i32_19 = arith.constant 8 : i32
    %31 = arith.muli %c0_i32_18, %c8_i32_19 : i32
    %32 = tpu.assume_multiple %31, 8 : i32
    %c0_20 = arith.constant 0 : index
    %33 = arith.index_cast %32 : i32 to index
    %c0_21 = arith.constant 0 : index
    %34 = vector.load %arg1[%c0_20, %33, %c0_21] : memref<2x8x32xf32, #tpu.memory_space<vmem>>, vector<2x8x32xf32>
    %35 = arith.index_cast %c0_i32_18 : i32 to index
    %c0_22 = arith.constant 0 : index
    %c0_23 = arith.constant 0 : index
    %36 = vector.load %arg4[%35, %c0_22, %c0_23] : memref<1x2x8xf32, #tpu.memory_space<vmem>>, vector<1x2x8xf32>
    %37 = vector.shape_cast %36 : vector<1x2x8xf32> to vector<2x8xf32>
    %c0_24 = arith.constant 0 : index
    %c0_25 = arith.constant 0 : index
    %38 = vector.load %arg5[%c0_24, %c0_25] : memref<2x32xf32, #tpu.memory_space<vmem>>, vector<2x32xf32>
    %39 = vector.shape_cast %37 : vector<2x8xf32> to vector<2x8x1xf32>
    %40 = vector.broadcast %39 : vector<2x8x1xf32> to vector<2x8x32xf32>
    %41 = arith.mulf %34, %40 : vector<2x8x32xf32>
    %cst_26 = arith.constant dense<0.000000e+00> : vector<2x32xf32>
    %42 = vector.multi_reduction <add>, %41, %cst_26 [1] : vector<2x8x32xf32> to vector<2x32xf32>
    %43 = arith.addf %38, %42 : vector<2x32xf32>
    %c0_27 = arith.constant 0 : index
    %c0_28 = arith.constant 0 : index
    %44 = vector.load %arg5[%c0_27, %c0_28] : memref<2x32xf32, #tpu.memory_space<vmem>>, vector<2x32xf32>
    tpu.vector_store %arg5[%c0_27, %c0_28], %43 {strides = array<i32>} : memref<2x32xf32, #tpu.memory_space<vmem>>, vector<2x32xf32>,
    %c1_i32_29 = arith.constant 1 : i32
    %c0_30 = arith.constant 0 : index
    %c0_31 = arith.constant 0 : index
    %45 = vector.load %arg5[%c0_30, %c0_31] : memref<2x32xf32, #tpu.memory_space<vmem>>, vector<2x32xf32>
    %c0_32 = arith.constant 0 : index
    %c0_33 = arith.constant 0 : index
    %46 = vector.load %arg3[%c0_32, %c0_33] : memref<2x32xf32, #tpu.memory_space<vmem>>, vector<2x32xf32>
    tpu.vector_store %arg3[%c0_32, %c0_33], %45 {strides = array<i32>} : memref<2x32xf32, #tpu.memory_space<vmem>>, vector<2x32xf32>,
    return
  }
  func.func @transform_0(%arg0: i32) -> (i32, i32, i32) {
    %c0_i32 = arith.constant 0 : i32
    %c0_i32_0 = arith.constant 0 : i32
    %c0_i32_1 = arith.constant 0 : i32
    return %arg0, %c0_i32, %c0_i32_0 : i32, i32, i32
  }
  func.func @transform_1(%arg0: i32) -> (i32, i32) {
    %c0_i32 = arith.constant 0 : i32
    %c0_i32_0 = arith.constant 0 : i32
    %c0_i32_1 = arith.constant 0 : i32
    return %c0_i32, %c0_i32_0 : i32, i32
  }
  func.func @transform_2(%arg0: i32) -> (i32, i32) {
    %c0_i32 = arith.constant 0 : i32
    %c0_i32_0 = arith.constant 0 : i32
    return %arg0, %c0_i32 : i32, i32
  }
}

</mosaic_0001>

<llo_original>
// kernel: tpu_custom_call.1
$region0: #{tpu_custom_call.1}
  #allocation0 [shape = 'u32[]', space=smem, size = 0x4, offset = 0x4, fixed_abs, tag = 'smem constant byte address 0x4 - core index']
  #allocation1 [shape = 'u32[144,128]{1,0:T(1,128)}', space=vmem, size = 0x12000, scoped, tag = 'internal scratch']
  #allocation2 [shape = 'f32[1,2,8]{2,1,0:T(2,128)}', space=vmem, size = 0x400, scoped, tag = 'scratch operand']
  #allocation3 [shape = 'f32[2,32]{1,0:T(2,128)}', space=vmem, size = 0x400, scoped, tag = 'scratch operand']
  %s0 = inlined_call_operand.hbm [shape: f32[2,8,32], index: 0, kind: input, shape index: {}]
  %s1 = inlined_call_operand.vmem [shape: f32[1,32], index: 1, kind: input, shape index: {}]
  %s2 = inlined_call_operand.hbm [shape: f32[2,32], index: 2, kind: output, shape index: {}]
  %s3 = sld [smem:[#allocation0]]
  $region22: #{tpu_custom_call.1} parent=0
    _
  %s5 = ssub.s32 1, %s3
  %s6 = scalar_select 0, %s5, %s3
  $region1: #{tpu_custom_call.1} parent=0
    #allocation4 [shape = 'u8[8192]{0}', space=vmem, size = 0x2000, scoped, tag = 'input window, operand 0, single buffered']
    #allocation5 [shape = 's32[1]{0}', space=sflag, size = 0x4, scoped, tag = 'scoped memory for tpu_custom_call.1']
    #allocation6 [shape = 's32[1]{0}', space=sflag, size = 0x4, scoped, tag = 'scoped memory for tpu_custom_call.1']
    #allocation7 [shape = 'u8[1024]{0}', space=vmem, size = 0x400, scoped, tag = 'output window, operand 0, single buffered']
    %7 = vsyncpa [#allocation5], 0
    %8 = vsyncpa [#allocation6], 0
    // Predicated region
    $region2: #{tpu_custom_call.1} parent=1 // pred_check
      _
    $region3: #{tpu_custom_call.1} parent=1 // pred_check_branch
      %10 = sbr.rel (0) target = $region5
    $region4: #{tpu_custom_call.1} parent=1 // pred_region
      %s12 = ssub.s32 256, 256
      %13 = vsyncadd [#allocation5], %s12
      %s14 = sshll.u32 [#allocation4], 4
      %s15 = int_to_ptr.vmem [resolvable:$true] %s14
      %20 = dma.hbm_to_vmem [thread:$0]  %s0, 256, %s15, [#allocation5], 128, 128, 8
    $region5: #{tpu_custom_call.1} parent=1 // pred_fallthru
      _
    // Predicated region
    $region6: #{tpu_custom_call.1} parent=1 // pred_check
      _
    $region7: #{tpu_custom_call.1} parent=1 // pred_check_branch
      %22 = sbr.rel (0) target = $region9
    $region8: #{tpu_custom_call.1} parent=1 // pred_region
      _
    $region9: #{tpu_custom_call.1} parent=1 // pred_fallthru
      _
    // Predicated region
    $region10: #{tpu_custom_call.1} parent=1 // pred_check
      _
    $region11: #{tpu_custom_call.1} parent=1 // pred_check_branch
      %24 = sbr.rel (0) target = $region13
    $region12: #{tpu_custom_call.1} parent=1 // pred_region
      %25 = dma.done [#allocation5], 256
    $region13: #{tpu_custom_call.1} parent=1 // pred_fallthru
      _
    %v26 = vld [vmem:[%s1] sm:$0x1]
    %v27 = vld [vmem:[#allocation4] sm:$0xff]
    %v28 = vld [vmem:[#allocation4 + $0x8] sm:$0xff]
    %v30 = vlaneseq
    %v31 = vshrl.u32 %v30, 7
    %v32 = vsub.s32 0, %v31
    %v33 = vrot.slane %v26, %v32
    %v35 = vmul.f32 %v27, %v33
    %v36 = vmul.f32 %v28, %v33
    %vm37 = vcmask 261120
    %v38 = vsel %vm37, %v35, 0.0
    %39 = vadd.xlane.f32.xlu0 %v38
    %v40 = vpop.xlane.xlu0 %39
    %v41 = vsel %vm37, %v36, 0.0
    %42 = vadd.xlane.f32.xlu0 %v41
    %v43 = vpop.xlane.xlu0 %42
    %v46 = vlaneseq
    %v47 = vand.u32 %v46, 127
    %v48 = vlaneseq
    %v49 = vshrl.u32 %v48, 7
    %v50 = vsub.s32 %v47, %v49
    %v51 = vrot.slane %v40, %v50
    %v52 = vlaneseq
    %v53 = vshrl.u32 %v52, 7
    %v54 = vsub.s32 %v47, %v53
    %v55 = vrot.slane %v43, %v54
    %vm56 = vcmask 1041409
    %v57 = vsel %vm56, %v55, %v51
    %vm59 = vcmask 58368
    %60 = vst.msk [vmem:[#allocation2] sm:$0x3] %vm59, %v57
    %v61 = vld [vmem:[#allocation2] sm:$0x3]
    %v62 = vsel %vm59, %v61, -inf
    %63 = vmax.xlane.f32.xlu0 %v62
    %v64 = vpop.xlane.xlu0 %63
    %v65 = vsub.f32 %v61, %v64
    %v66 = vmul.f32 %v65, 1.442695
    %v67 = vpow.pop %v66
    %v68 = vsel %vm59, %v67, 0.0
    %69 = vadd.xlane.f32.xlu0 %v68
    %v70 = vpop.xlane.xlu0 %69
    %v71 = vadd.f32 %v70, 0.0
    %v72 = vrcp.pop %v71
    %v73 = vmul.f32 %v67, %v72
    %74 = vst.msk [vmem:[#allocation2] sm:$0x3] %vm59, %v73
    %vm75 = vcmask 254976
    %76 = vst.msk [vmem:[#allocation3] sm:$0x3] %vm75, 0.0
    %v77 = vld [vmem:[#allocation4] sm:$0xff]
    %v78 = vld [vmem:[#allocation4 + $0x8] sm:$0xff]
    %v79 = vld [vmem:[#allocation2] sm:$0x3]
    %v80 = vld [vmem:[#allocation3] sm:$0x3]
    %v81 = vlaneseq
    %v82 = vshrl.u32 %v81, 7
    %v83 = vsub.s32 0, %v82
    %v84 = vrot.slane %v79, %v83
    %86 = vbcast.lane.b32.xlu0 %v84, 256
    %v87 = vpop.permute.xlu0 %86
    %v88 = vlaneseq
    %v89 = vshrl.u32 %v88, 7
    %v90 = vsub.s32 1, %v89
    %v91 = vrot.slane %v79, %v90
    %93 = vbcast.lane.b32.xlu0 %v91, 256
    %v94 = vpop.permute.xlu0 %93
    %v95 = vmul.f32 %v77, %v87
    %v96 = vmul.f32 %v78, %v94
    %v97 = vsel %vm37, %v95, 0.0
    %v98 = vrot.slane %v97, 4
    %v99 = vadd.f32 %v97, %v98
    %v100 = vrot.slane %v99, 2
    %v101 = vadd.f32 %v99, %v100
    %v102 = vrot.slane %v101, 1
    %v103 = vadd.f32 %v101, %v102
    %v104 = vsel %vm37, %v96, 0.0
    %v105 = vrot.slane %v104, 4
    %v106 = vadd.f32 %v104, %v105
    %v107 = vrot.slane %v106, 2
    %v108 = vadd.f32 %v106, %v107
    %v109 = vrot.slane %v108, 1
    %v110 = vadd.f32 %v108, %v109
    %v113 = vsel %vm56, %v110, %v103
    %v115 = vadd.f32 %v80, %v113
    %116 = vst.msk [vmem:[#allocation3] sm:$0x3] %vm75, %v115
    %v117 = vld [vmem:[#allocation3] sm:$0x3]
    %118 = vst.msk [vmem:[#allocation7] sm:$0x3] %vm75, %v117
    // Predicated region
    $region14: #{tpu_custom_call.1} parent=1 // pred_check
      _
    $region15: #{tpu_custom_call.1} parent=1 // pred_check_branch
      %120 = sbr.rel (0) target = $region17
    $region16: #{tpu_custom_call.1} parent=1 // pred_region
      %s122 = ssub.s32 32, 32
      %123 = vsyncadd [#allocation6], %s122
      %s125 = sshll.u32 [#allocation7], 4
      %s126 = int_to_ptr.vmem [resolvable:$true] %s125
      %128 = dma.vmem_to_hbm [thread:$0]  %s126, 32, %s2, [#allocation6]
    $region17: #{tpu_custom_call.1} parent=1 // pred_fallthru
      _
    // Predicated region
    $region18: #{tpu_custom_call.1} parent=1 // pred_check
      _
    $region19: #{tpu_custom_call.1} parent=1 // pred_check_branch
      %130 = sbr.rel (0) target = $region21
    $region20: #{tpu_custom_call.1} parent=1 // pred_region
      %131 = dma.done [#allocation6], 32
    $region21: #{tpu_custom_call.1} parent=1 // pred_fallthru
      _
    %132 = vsyncpa [#allocation5], 1
    %133 = vsyncpa [#allocation6], 1

</llo_original>
